<compile_context>
chip_gen: v5e
topology: v5e:2x2
jax: 0.10.0
libtpu: 0.0.40
codegen_flags: <defaults>
</compile_context>

<pallas_src>
import math

import jax
import jax.numpy as jnp
from jax import lax
from jax.experimental import pallas as pl
from jax.experimental.pallas import tpu as pltpu

_EPS = 1e-8


def _round_up(x, m):
    return ((x + m - 1) // m) * m


# ---------------------------------------------------------------------------
# Kernel 1: row-wise L2 normalization   Wn = W / clamp(||W||_row, eps)
# One pass over W; keeps torch's clamp(norm, eps) semantics exactly.
# ---------------------------------------------------------------------------
def _row_normalize_kernel(w_ref, o_ref):
    w = w_ref[...].astype(jnp.float32)                 # (TB, D)
    sumsq = jnp.sum(w * w, axis=1, keepdims=True)      # (TB, 1)
    norm = jnp.sqrt(sumsq)
    inv = 1.0 / jnp.maximum(norm, _EPS)                # reciprocal of clamped norm
    o_ref[...] = (w * inv).astype(o_ref.dtype)


def row_normalize(w_pad, *, block_rows):
    n_pad, d = w_pad.shape
    return pl.pallas_call(
        _row_normalize_kernel,
        out_shape=jax.ShapeDtypeStruct((n_pad, d), jnp.float32),
        grid_spec=pltpu.PrefetchScalarGridSpec(
            num_scalar_prefetch=0,
            grid=(n_pad // block_rows,),
            in_specs=[pl.BlockSpec((block_rows, d), lambda i: (i, 0))],
            out_specs=pl.BlockSpec((block_rows, d), lambda i: (i, 0)),
        ),
        compiler_params=pltpu.CompilerParams(
            dimension_semantics=("parallel",)),
    )(w_pad)


# ---------------------------------------------------------------------------
# Kernel 2: A = relu(offdiag(Wn @ Wn.T)), 2D (row, col) tiled grid.
# Each step: (TM, D) x (TN, D)^T on the MXU -> (TM, TN) output tile.
# ---------------------------------------------------------------------------
def _cosine_adj_kernel(wl_ref, wr_ref, a_ref):
    i = pl.program_id(0)
    j = pl.program_id(1)

    wl = wl_ref[...]                                   # (TM, D) f32, pre-normalized
    wr = wr_ref[...]                                   # (TN, D) f32, pre-normalized

    # Contract the D axes directly; Mosaic picks the RHS layout, so no
    # per-step transpose is materialized.
    a = lax.dot_general(wl, wr, (((1,), (1,)), ((), ())),
                        preferred_element_type=jnp.float32)
    a_ref[...] = jnp.maximum(a, 0.0).astype(a_ref.dtype)

    # With square, aligned tiles the global diagonal only crosses tiles on
    # the grid diagonal -> mask only there.
    @pl.when(i == j)
    def _():
        blk = a_ref[...]
        r = lax.broadcasted_iota(jnp.int32, blk.shape, 0)
        c = lax.broadcasted_iota(jnp.int32, blk.shape, 1)
        a_ref[...] = jnp.where(r == c, jnp.zeros_like(blk), blk)


def cosine_adjacency(w, *, tile=256, out_dtype=jnp.float32):
    """A = relu(offdiag(normalize(W) @ normalize(W).T)) via Pallas."""
    n, d = w.shape

    # Square tiles, 128-lane aligned so output stores are unmasked lane-dense
    # vst; shrink to the padded problem size when N is small.
    tile_n = min(tile, _round_up(n, 128))
    n_pad = _round_up(n, tile_n)

    # Zero-pad rows: padded rows have norm 0 -> clamp(eps) -> normalize to
    # all-zeros -> contribute only zeros to A; sliced off below anyway.
    w_pad = w if n_pad == n else jnp.pad(w, ((0, n_pad - n), (0, 0)))

    wn = row_normalize(w_pad, block_rows=tile_n)

    grid = (n_pad // tile_n, n_pad // tile_n)

    # Double-buffered f32 tiles: 2 inputs (tile_n x d) + 1 output (tile_n^2).
    tile_bytes = 4 * (2 * tile_n * d + tile_n * tile_n)
    vmem_limit = int(min(64 << 20, max(4 * tile_bytes, 16 << 20)))

    cost = pl.CostEstimate(
        flops=2 * n_pad * n_pad * d,
        transcendentals=0,
        bytes_accessed=4 * (n_pad * n_pad + 2 * n_pad * d),
    )

    a_pad = pl.pallas_call(
        _cosine_adj_kernel,
        out_shape=jax.ShapeDtypeStruct((n_pad, n_pad), out_dtype),
        grid_spec=pltpu.PrefetchScalarGridSpec(
            num_scalar_prefetch=0,
            grid=grid,
            in_specs=[
                pl.BlockSpec((tile_n, d), lambda i, j: (i, 0)),   # row tile
                pl.BlockSpec((tile_n, d), lambda i, j: (j, 0)),   # col tile
            ],
            out_specs=pl.BlockSpec((tile_n, tile_n), lambda i, j: (i, j)),
        ),
        compiler_params=pltpu.CompilerParams(
            dimension_semantics=("parallel", "parallel"),
            vmem_limit_bytes=vmem_limit),
        cost_estimate=cost,
    )(wn, wn)

    if n_pad != n:
        a_pad = a_pad[:n, :n]
    return a_pad


def kaiming_uniform(key, shape, a=math.sqrt(5)):
    """Deterministic kaiming_uniform_ equivalent for a 2D (N, D) weight."""
    fan_in = shape[1]
    gain = math.sqrt(2.0 / (1.0 + a * a))
    bound = gain * math.sqrt(3.0 / fan_in)
    return jax.random.uniform(key, shape, jnp.float32, -bound, bound)


def single_embedding_forward(weight, *, out_dtype=jnp.float32):
    """Reproduces SingleEmbedding.forward() on the warmup branch.

    Returns (edge_indices[2, N*N], edge_attr[N*N], A[N, N]).
    """
    n = weight.shape[0]
    A = cosine_adjacency(weight, out_dtype=out_dtype)

    # Static fully-connected edge index list (warmup path).
    edge_indices_mat = jnp.broadcast_to(jnp.arange(n, dtype=jnp.int32), (n, n))
    fc_edge_indices = jnp.stack(
        [edge_indices_mat.T.flatten(), edge_indices_mat.flatten()], axis=0)
    edge_attr = A.flatten()

    # TODO(synk): post-warmup top-k pruning branch (A.sort + boolean masking)
    # produces data-dependent output shapes and is not expressible as a
    # fixed-shape Pallas kernel; only the warmup branch is implemented.
    return fc_edge_indices, edge_attr, A


def _reference(weight):
    eps = 1e-8
    norm = jnp.linalg.norm(weight, axis=1, keepdims=True)
    wn = weight / jnp.maximum(norm, eps)
    A = wn @ wn.T
    A = A * (1.0 - jnp.eye(weight.shape[0], dtype=A.dtype))
    return jnp.maximum(A, 0.0)


if __name__ == "__main__":
    num_nodes = 32
    embed_dim = 16

    key = jax.random.PRNGKey(0)
    weight = kaiming_uniform(key, (num_nodes, embed_dim))

    edge_indices, edge_attr, A = single_embedding_forward(weight)
    jax.block_until_ready((edge_indices, edge_attr, A))

    # Correctness check against a pure-JAX reference.
    A_ref = _reference(weight)
    assert A.shape == (num_nodes, num_nodes)
    assert edge_indices.shape == (2, num_nodes * num_nodes)
    assert edge_attr.shape == (num_nodes * num_nodes,)
    assert jnp.allclose(A, A_ref, atol=1e-5), "mismatch vs reference"
    assert jnp.allclose(edge_attr, A_ref.flatten(), atol=1e-5)

    print("KERNEL_OK")
</pallas_src>

<mosaic_0001>
module attributes {stable_mosaic.version = 11 : i64} {
  func.func @_row_normalize_kernel(%arg0: i32, %arg1: memref<128x16xf32, #tpu.memory_space<vmem>>, %arg2: memref<128x16xf32, #tpu.memory_space<vmem>>) attributes {dimension_semantics = [#tpu.dimension_semantics<parallel>], iteration_bounds = array<i64: 1>, scalar_prefetch = 0 : i64, scratch_operands = 0 : i64, tpu.core_type = #tpu.core_type<tc>, window_params = [{transform_indices = @transform_0, window_bounds = array<i64: 128, 16>}, {transform_indices = @transform_1, window_bounds = array<i64: 128, 16>}]} {
    %c0 = arith.constant 0 : index
    %c0_0 = arith.constant 0 : index
    %0 = vector.load %arg1[%c0, %c0_0] : memref<128x16xf32, #tpu.memory_space<vmem>>, vector<128x16xf32>
    %1 = arith.mulf %0, %0 : vector<128x16xf32>
    %cst = arith.constant dense<0.000000e+00> : vector<128xf32>
    %2 = vector.multi_reduction <add>, %1, %cst [1] : vector<128x16xf32> to vector<128xf32>
    %3 = vector.shape_cast %2 : vector<128xf32> to vector<128x1xf32>
    %4 = math.sqrt %3 : vector<128x1xf32>
    %cst_1 = arith.constant 9.99999993E-9 : f32
    %5 = vector.broadcast %cst_1 : f32 to vector<128x1xf32>
    %6 = arith.maximumf %4, %5 : vector<128x1xf32>
    %cst_2 = arith.constant 1.000000e+00 : f32
    %7 = vector.broadcast %cst_2 : f32 to vector<128x1xf32>
    %8 = arith.divf %7, %6 : vector<128x1xf32>
    %9 = vector.broadcast %8 : vector<128x1xf32> to vector<128x16xf32>
    %10 = arith.mulf %0, %9 : vector<128x16xf32>
    %c0_3 = arith.constant 0 : index
    %c0_4 = arith.constant 0 : index
    %11 = vector.load %arg2[%c0_3, %c0_4] : memref<128x16xf32, #tpu.memory_space<vmem>>, vector<128x16xf32>
    tpu.vector_store %arg2[%c0_3, %c0_4], %10 {strides = array<i32>} : memref<128x16xf32, #tpu.memory_space<vmem>>, vector<128x16xf32>,
    return
  }
  func.func @transform_0(%arg0: i32) -> (i32, i32) {
    %c0_i32 = arith.constant 0 : i32
    %c0_i32_0 = arith.constant 0 : i32
    return %arg0, %c0_i32 : i32, i32
  }
  func.func @transform_1(%arg0: i32) -> (i32, i32) {
    %c0_i32 = arith.constant 0 : i32
    %c0_i32_0 = arith.constant 0 : i32
    return %arg0, %c0_i32 : i32, i32
  }
}

</mosaic_0001>

<llo_original>
// kernel: tpu_custom_call.1
$region0: #{tpu_custom_call.1}
  #allocation0 [shape = 'u32[]', space=smem, size = 0x4, offset = 0x4, fixed_abs, tag = 'smem constant byte address 0x4 - core index']
  #allocation1 [shape = 'u32[72,128]{1,0:T(1,128)}', space=vmem, size = 0x9000, scoped, tag = 'internal scratch']
  %s0 = inlined_call_operand.vmem [shape: f32[128,16], index: 0, kind: input, shape index: {}]
  %s1 = inlined_call_operand.vmem [shape: f32[128,16], index: 1, kind: output, shape index: {}]
  %s2 = sld [smem:[#allocation0]]
  $region14: #{tpu_custom_call.1} parent=0
    _
  %s4 = ssub.s32 1, %s2
  %s5 = scalar_select 0, %s4, %s2
  // Predicated region
  $region2: #{tpu_custom_call.1} parent=0 // pred_check
    _
  $region3: #{tpu_custom_call.1} parent=0 // pred_check_branch
    %7 = sbr.rel (0) target = $region5
  $region4: #{tpu_custom_call.1} parent=0 // pred_region
    _
  $region5: #{tpu_custom_call.1} parent=0 // pred_fallthru
    _
  %v8 = vld [vmem:[%s0] sm:$0xff]
  %v9 = vld [vmem:[%s0 + $0x8] sm:$0xff]
  %v10 = vld [vmem:[%s0 + $0x10] sm:$0xff]
  %v11 = vld [vmem:[%s0 + $0x18] sm:$0xff]
  %v12 = vld [vmem:[%s0 + $0x20] sm:$0xff]
  %v13 = vld [vmem:[%s0 + $0x28] sm:$0xff]
  %v14 = vld [vmem:[%s0 + $0x30] sm:$0xff]
  %v15 = vld [vmem:[%s0 + $0x38] sm:$0xff]
  %v16 = vld [vmem:[%s0 + $0x40] sm:$0xff]
  %v17 = vld [vmem:[%s0 + $0x48] sm:$0xff]
  %v18 = vld [vmem:[%s0 + $0x50] sm:$0xff]
  %v19 = vld [vmem:[%s0 + $0x58] sm:$0xff]
  %v20 = vld [vmem:[%s0 + $0x60] sm:$0xff]
  %v21 = vld [vmem:[%s0 + $0x68] sm:$0xff]
  %v22 = vld [vmem:[%s0 + $0x70] sm:$0xff]
  %v23 = vld [vmem:[%s0 + $0x78] sm:$0xff]
  %v24 = vmul.f32 %v8, %v8
  %v25 = vmul.f32 %v9, %v9
  %v26 = vmul.f32 %v10, %v10
  %v27 = vmul.f32 %v11, %v11
  %v28 = vmul.f32 %v12, %v12
  %v29 = vmul.f32 %v13, %v13
  %v30 = vmul.f32 %v14, %v14
  %v31 = vmul.f32 %v15, %v15
  %v32 = vmul.f32 %v16, %v16
  %v33 = vmul.f32 %v17, %v17
  %v34 = vmul.f32 %v18, %v18
  %v35 = vmul.f32 %v19, %v19
  %v36 = vmul.f32 %v20, %v20
  %v37 = vmul.f32 %v21, %v21
  %v38 = vmul.f32 %v22, %v22
  %v39 = vmul.f32 %v23, %v23
  %vm40 = vcmask 130048
  %v41 = vsel %vm40, %v24, 0.0
  %42 = vadd.xlane.f32.xlu0 %v41
  %v43 = vpop.xlane.xlu0 %42
  %v44 = vsel %vm40, %v25, 0.0
  %45 = vadd.xlane.f32.xlu0 %v44
  %v46 = vpop.xlane.xlu0 %45
  %v47 = vsel %vm40, %v26, 0.0
  %48 = vadd.xlane.f32.xlu0 %v47
  %v49 = vpop.xlane.xlu0 %48
  %v50 = vsel %vm40, %v27, 0.0
  %51 = vadd.xlane.f32.xlu0 %v50
  %v52 = vpop.xlane.xlu0 %51
  %v53 = vsel %vm40, %v28, 0.0
  %54 = vadd.xlane.f32.xlu0 %v53
  %v55 = vpop.xlane.xlu0 %54
  %v56 = vsel %vm40, %v29, 0.0
  %57 = vadd.xlane.f32.xlu0 %v56
  %v58 = vpop.xlane.xlu0 %57
  %v59 = vsel %vm40, %v30, 0.0
  %60 = vadd.xlane.f32.xlu0 %v59
  %v61 = vpop.xlane.xlu0 %60
  %v62 = vsel %vm40, %v31, 0.0
  %63 = vadd.xlane.f32.xlu0 %v62
  %v64 = vpop.xlane.xlu0 %63
  %v65 = vsel %vm40, %v32, 0.0
  %66 = vadd.xlane.f32.xlu0 %v65
  %v67 = vpop.xlane.xlu0 %66
  %v68 = vsel %vm40, %v33, 0.0
  %69 = vadd.xlane.f32.xlu0 %v68
  %v70 = vpop.xlane.xlu0 %69
  %v71 = vsel %vm40, %v34, 0.0
  %72 = vadd.xlane.f32.xlu0 %v71
  %v73 = vpop.xlane.xlu0 %72
  %v74 = vsel %vm40, %v35, 0.0
  %75 = vadd.xlane.f32.xlu0 %v74
  %v76 = vpop.xlane.xlu0 %75
  %v77 = vsel %vm40, %v36, 0.0
  %78 = vadd.xlane.f32.xlu0 %v77
  %v79 = vpop.xlane.xlu0 %78
  %v80 = vsel %vm40, %v37, 0.0
  %81 = vadd.xlane.f32.xlu0 %v80
  %v82 = vpop.xlane.xlu0 %81
  %v83 = vsel %vm40, %v38, 0.0
  %84 = vadd.xlane.f32.xlu0 %v83
  %v85 = vpop.xlane.xlu0 %84
  %v86 = vsel %vm40, %v39, 0.0
  %87 = vadd.xlane.f32.xlu0 %v86
  %v88 = vpop.xlane.xlu0 %87
  %v89 = vrsqrt.pop %v43
  %v90 = vmul.f32 %v89, %v43
  %v91 = vmul.f32 %v90, %v89
  %v92 = vmul.f32 0.5, %v91
  %v93 = vsub.f32 1.5, %v92
  %v94 = vmul.f32 %v89, %v93
  %v95 = vmul.f32 %v43, %v94
  %vm96 = vcmp.eq.f32.partialorder %v43, inf
  %v97 = vsel %vm96, %v43, %v95
  %vm98 = vcmp.eq.f32.partialorder %v43, 0.0
  %v99 = vand.u32 %v43, 2147483648
  %v100 = vsel %vm98, %v99, %v97
  %v101 = vrsqrt.pop %v46
  %v102 = vmul.f32 %v101, %v46
  %v103 = vmul.f32 %v102, %v101
  %v104 = vmul.f32 0.5, %v103
  %v105 = vsub.f32 1.5, %v104
  %v106 = vmul.f32 %v101, %v105
  %v107 = vmul.f32 %v46, %v106
  %vm108 = vcmp.eq.f32.partialorder %v46, inf
  %v109 = vsel %vm108, %v46, %v107
  %vm110 = vcmp.eq.f32.partialorder %v46, 0.0
  %v111 = vand.u32 %v46, 2147483648
  %v112 = vsel %vm110, %v111, %v109
  %v113 = vrsqrt.pop %v49
  %v114 = vmul.f32 %v113, %v49
  %v115 = vmul.f32 %v114, %v113
  %v116 = vmul.f32 0.5, %v115
  %v117 = vsub.f32 1.5, %v116
  %v118 = vmul.f32 %v113, %v117
  %v119 = vmul.f32 %v49, %v118
  %vm120 = vcmp.eq.f32.partialorder %v49, inf
  %v121 = vsel %vm120, %v49, %v119
  %vm122 = vcmp.eq.f32.partialorder %v49, 0.0
  %v123 = vand.u32 %v49, 2147483648
  %v124 = vsel %vm122, %v123, %v121
  %v125 = vrsqrt.pop %v52
  %v126 = vmul.f32 %v125, %v52
  %v127 = vmul.f32 %v126, %v125
  %v128 = vmul.f32 0.5, %v127
  %v129 = vsub.f32 1.5, %v128
  %v130 = vmul.f32 %v125, %v129
  %v131 = vmul.f32 %v52, %v130
  %vm132 = vcmp.eq.f32.partialorder %v52, inf
  %v133 = vsel %vm132, %v52, %v131
  %vm134 = vcmp.eq.f32.partialorder %v52, 0.0
  %v135 = vand.u32 %v52, 2147483648
  %v136 = vsel %vm134, %v135, %v133
  %v137 = vrsqrt.pop %v55
  %v138 = vmul.f32 %v137, %v55
  %v139 = vmul.f32 %v138, %v137
  %v140 = vmul.f32 0.5, %v139
  %v141 = vsub.f32 1.5, %v140
  %v142 = vmul.f32 %v137, %v141
  %v143 = vmul.f32 %v55, %v142
  %vm144 = vcmp.eq.f32.partialorder %v55, inf
  %v145 = vsel %vm144, %v55, %v143
  %vm146 = vcmp.eq.f32.partialorder %v55, 0.0
  %v147 = vand.u32 %v55, 2147483648
  %v148 = vsel %vm146, %v147, %v145
  %v149 = vrsqrt.pop %v58
  %v150 = vmul.f32 %v149, %v58
  %v151 = vmul.f32 %v150, %v149
  %v152 = vmul.f32 0.5, %v151
  %v153 = vsub.f32 1.5, %v152
  %v154 = vmul.f32 %v149, %v153
  %v155 = vmul.f32 %v58, %v154
  %vm156 = vcmp.eq.f32.partialorder %v58, inf
  %v157 = vsel %vm156, %v58, %v155
  %vm158 = vcmp.eq.f32.partialorder %v58, 0.0
  %v159 = vand.u32 %v58, 2147483648
  %v160 = vsel %vm158, %v159, %v157
  %v161 = vrsqrt.pop %v61
  %v162 = vmul.f32 %v161, %v61
  %v163 = vmul.f32 %v162, %v161
  %v164 = vmul.f32 0.5, %v163
  %v165 = vsub.f32 1.5, %v164
  %v166 = vmul.f32 %v161, %v165
  %v167 = vmul.f32 %v61, %v166
  %vm168 = vcmp.eq.f32.partialorder %v61, inf
  %v169 = vsel %vm168, %v61, %v167
  %vm170 = vcmp.eq.f32.partialorder %v61, 0.0
  %v171 = vand.u32 %v61, 2147483648
  %v172 = vsel %vm170, %v171, %v169
  %v173 = vrsqrt.pop %v64
  %v174 = vmul.f32 %v173, %v64
  %v175 = vmul.f32 %v174, %v173
  %v176 = vmul.f32 0.5, %v175
  %v177 = vsub.f32 1.5, %v176
  %v178 = vmul.f32 %v173, %v177
  %v179 = vmul.f32 %v64, %v178
  %vm180 = vcmp.eq.f32.partialorder %v64, inf
  %v181 = vsel %vm180, %v64, %v179
  %vm182 = vcmp.eq.f32.partialorder %v64, 0.0
  %v183 = vand.u32 %v64, 2147483648
  %v184 = vsel %vm182, %v183, %v181
  %v185 = vrsqrt.pop %v67
  %v186 = vmul.f32 %v185, %v67
  %v187 = vmul.f32 %v186, %v185
  %v188 = vmul.f32 0.5, %v187
  %v189 = vsub.f32 1.5, %v188
  %v190 = vmul.f32 %v185, %v189
  %v191 = vmul.f32 %v67, %v190
  %vm192 = vcmp.eq.f32.partialorder %v67, inf
  %v193 = vsel %vm192, %v67, %v191
  %vm194 = vcmp.eq.f32.partialorder %v67, 0.0
  %v195 = vand.u32 %v67, 2147483648
  %v196 = vsel %vm194, %v195, %v193
  %v197 = vrsqrt.pop %v70
  %v198 = vmul.f32 %v197, %v70
  %v199 = vmul.f32 %v198, %v197
  %v200 = vmul.f32 0.5, %v199
  %v201 = vsub.f32 1.5, %v200
  %v202 = vmul.f32 %v197, %v201
  %v203 = vmul.f32 %v70, %v202
  %vm204 = vcmp.eq.f32.partialorder %v70, inf
  %v205 = vsel %vm204, %v70, %v203
  %vm206 = vcmp.eq.f32.partialorder %v70, 0.0
  %v207 = vand.u32 %v70, 2147483648
  %v208 = vsel %vm206, %v207, %v205
  %v209 = vrsqrt.pop %v73
  %v210 = vmul.f32 %v209, %v73
  %v211 = vmul.f32 %v210, %v209
  %v212 = vmul.f32 0.5, %v211
  %v213 = vsub.f32 1.5, %v212
  %v214 = vmul.f32 %v209, %v213
  %v215 = vmul.f32 %v73, %v214
  %vm216 = vcmp.eq.f32.partialorder %v73, inf
  %v217 = vsel %vm216, %v73, %v215
  %vm218 = vcmp.eq.f32.partialorder %v73, 0.0
  %v219 = vand.u32 %v73, 2147483648
  %v220 = vsel %vm218, %v219, %v217
  %v221 = vrsqrt.pop %v76
  %v222 = vmul.f32 %v221, %v76
  %v223 = vmul.f32 %v222, %v221
  %v224 = vmul.f32 0.5, %v223
  %v225 = vsub.f32 1.5, %v224
  %v226 = vmul.f32 %v221, %v225
  %v227 = vmul.f32 %v76, %v226
  %vm228 = vcmp.eq.f32.partialorder %v76, inf
  %v229 = vsel %vm228, %v76, %v227
  %vm230 = vcmp.eq.f32.partialorder %v76, 0.0
  %v231 = vand.u32 %v76, 2147483648
  %v232 = vsel %vm230, %v231, %v229
  %v233 = vrsqrt.pop %v79
  %v234 = vmul.f32 %v233, %v79
  %v235 = vmul.f32 %v234, %v233
  %v236 = vmul.f32 0.5, %v235
  %v237 = vsub.f32 1.5, %v236
  %v238 = vmul.f32 %v233, %v237
  %v239 = vmul.f32 %v79, %v238
  %vm240 = vcmp.eq.f32.partialorder %v79, inf
  %v241 = vsel %vm240, %v79, %v239
  %vm242 = vcmp.eq.f32.partialorder %v79, 0.0
  %v243 = vand.u32 %v79, 2147483648
  %v244 = vsel %vm242, %v243, %v241
  %v245 = vrsqrt.pop %v82
  %v246 = vmul.f32 %v245, %v82
  %v247 = vmul.f32 %v246, %v245
  %v248 = vmul.f32 0.5, %v247
  %v249 = vsub.f32 1.5, %v248
  %v250 = vmul.f32 %v245, %v249
  %v251 = vmul.f32 %v82, %v250
  %vm252 = vcmp.eq.f32.partialorder %v82, inf
  %v253 = vsel %vm252, %v82, %v251
  %vm254 = vcmp.eq.f32.partialorder %v82, 0.0
  %v255 = vand.u32 %v82, 2147483648
  %v256 = vsel %vm254, %v255, %v253
  %v257 = vrsqrt.pop %v85
  %v258 = vmul.f32 %v257, %v85
  %v259 = vmul.f32 %v258, %v257
  %v260 = vmul.f32 0.5, %v259
  %v261 = vsub.f32 1.5, %v260
  %v262 = vmul.f32 %v257, %v261
  %v263 = vmul.f32 %v85, %v262
  %vm264 = vcmp.eq.f32.partialorder %v85, inf
  %v265 = vsel %vm264, %v85, %v263
  %vm266 = vcmp.eq.f32.partialorder %v85, 0.0
  %v267 = vand.u32 %v85, 2147483648
  %v268 = vsel %vm266, %v267, %v265
  %v269 = vrsqrt.pop %v88
  %v270 = vmul.f32 %v269, %v88
  %v271 = vmul.f32 %v270, %v269
  %v272 = vmul.f32 0.5, %v271
  %v273 = vsub.f32 1.5, %v272
  %v274 = vmul.f32 %v269, %v273
  %v275 = vmul.f32 %v88, %v274
  %vm276 = vcmp.eq.f32.partialorder %v88, inf
  %v277 = vsel %vm276, %v88, %v275
  %vm278 = vcmp.eq.f32.partialorder %v88, 0.0
  %v279 = vand.u32 %v88, 2147483648
  %v280 = vsel %vm278, %v279, %v277
  %v281 = vmax.f32 %v100, 1e-08
  %v282 = vmax.f32 %v112, 1e-08
  %v283 = vmax.f32 %v124, 1e-08
  %v284 = vmax.f32 %v136, 1e-08
  %v285 = vmax.f32 %v148, 1e-08
  %v286 = vmax.f32 %v160, 1e-08
  %v287 = vmax.f32 %v172, 1e-08
  %v288 = vmax.f32 %v184, 1e-08
  %v289 = vmax.f32 %v196, 1e-08
  %v290 = vmax.f32 %v208, 1e-08
  %v291 = vmax.f32 %v220, 1e-08
  %v292 = vmax.f32 %v232, 1e-08
  %v293 = vmax.f32 %v244, 1e-08
  %v294 = vmax.f32 %v256, 1e-08
  %v295 = vmax.f32 %v268, 1e-08
  %v296 = vmax.f32 %v280, 1e-08
  %v297 = vrcp.pop %v281
  %v298 = vmul.f32 %v281, %v297
  %v299 = vsub.f32 1.0, %v298
  %v300 = vmul.f32 %v297, %v299
  %v301 = vadd.f32 %v297, %v300
  %vm302 = vweird.f32 %v281
  %vm303 = vweird.f32 %v297
  %vm304 = vmor %vm302, %vm303
  %v305 = vsel %vm304, %v297, %v301
  %v306 = vand.u32 2147483647, %v281
  %vm307 = vcmp.eq.f32.partialorder %v306, 8.507059e+37
  %v308 = vand.u32 %v281, 2147483648
  %v309 = vor.u32 1.1754944e-38, %v308
  %v310 = vsel %vm307, %v309, %v305
  %v311 = vmul.f32 1.0, %v310
  %v312 = vrcp.pop %v282
  %v313 = vmul.f32 %v282, %v312
  %v314 = vsub.f32 1.0, %v313
  %v315 = vmul.f32 %v312, %v314
  %v316 = vadd.f32 %v312, %v315
  %vm317 = vweird.f32 %v282
  %vm318 = vweird.f32 %v312
  %vm319 = vmor %vm317, %vm318
  %v320 = vsel %vm319, %v312, %v316
  %v321 = vand.u32 2147483647, %v282
  %vm322 = vcmp.eq.f32.partialorder %v321, 8.507059e+37
  %v323 = vand.u32 %v282, 2147483648
  %v324 = vor.u32 1.1754944e-38, %v323
  %v325 = vsel %vm322, %v324, %v320
  %v326 = vmul.f32 1.0, %v325
  %v327 = vrcp.pop %v283
  %v328 = vmul.f32 %v283, %v327
  %v329 = vsub.f32 1.0, %v328
  %v330 = vmul.f32 %v327, %v329
  %v331 = vadd.f32 %v327, %v330
  %vm332 = vweird.f32 %v283
  %vm333 = vweird.f32 %v327
  %vm334 = vmor %vm332, %vm333
  %v335 = vsel %vm334, %v327, %v331
  %v336 = vand.u32 2147483647, %v283
  %vm337 = vcmp.eq.f32.partialorder %v336, 8.507059e+37
  %v338 = vand.u32 %v283, 2147483648
  %v339 = vor.u32 1.1754944e-38, %v338
  %v340 = vsel %vm337, %v339, %v335
  %v341 = vmul.f32 1.0, %v340
  %v342 = vrcp.pop %v284
  %v343 = vmul.f32 %v284, %v342
  %v344 = vsub.f32 1.0, %v343
  %v345 = vmul.f32 %v342, %v344
  %v346 = vadd.f32 %v342, %v345
  %vm347 = vweird.f32 %v284
  %vm348 = vweird.f32 %v342
  %vm349 = vmor %vm347, %vm348
  %v350 = vsel %vm349, %v342, %v346
  %v351 = vand.u32 2147483647, %v284
  %vm352 = vcmp.eq.f32.partialorder %v351, 8.507059e+37
  %v353 = vand.u32 %v284, 2147483648
  %v354 = vor.u32 1.1754944e-38, %v353
  %v355 = vsel %vm352, %v354, %v350
  %v356 = vmul.f32 1.0, %v355
  %v357 = vrcp.pop %v285
  %v358 = vmul.f32 %v285, %v357
  %v359 = vsub.f32 1.0, %v358
  %v360 = vmul.f32 %v357, %v359
  %v361 = vadd.f32 %v357, %v360
  %vm362 = vweird.f32 %v285
  %vm363 = vweird.f32 %v357
  %vm364 = vmor %vm362, %vm363
  %v365 = vsel %vm364, %v357, %v361
  %v366 = vand.u32 2147483647, %v285
  %vm367 = vcmp.eq.f32.partialorder %v366, 8.507059e+37
  %v368 = vand.u32 %v285, 2147483648
  %v369 = vor.u32 1.1754944e-38, %v368
  %v370 = vsel %vm367, %v369, %v365
  %v371 = vmul.f32 1.0, %v370
  %v372 = vrcp.pop %v286
  %v373 = vmul.f32 %v286, %v372
  %v374 = vsub.f32 1.0, %v373
  %v375 = vmul.f32 %v372, %v374
  %v376 = vadd.f32 %v372, %v375
  %vm377 = vweird.f32 %v286
  %vm378 = vweird.f32 %v372
  %vm379 = vmor %vm377, %vm378
  %v380 = vsel %vm379, %v372, %v376
  %v381 = vand.u32 2147483647, %v286
  %vm382 = vcmp.eq.f32.partialorder %v381, 8.507059e+37
  %v383 = vand.u32 %v286, 2147483648
  %v384 = vor.u32 1.1754944e-38, %v383
  %v385 = vsel %vm382, %v384, %v380
  %v386 = vmul.f32 1.0, %v385
  %v387 = vrcp.pop %v287
  %v388 = vmul.f32 %v287, %v387
  %v389 = vsub.f32 1.0, %v388
  %v390 = vmul.f32 %v387, %v389
  %v391 = vadd.f32 %v387, %v390
  %vm392 = vweird.f32 %v287
  %vm393 = vweird.f32 %v387
  %vm394 = vmor %vm392, %vm393
  %v395 = vsel %vm394, %v387, %v391
  %v396 = vand.u32 2147483647, %v287
  %vm397 = vcmp.eq.f32.partialorder %v396, 8.507059e+37
  %v398 = vand.u32 %v287, 2147483648
  %v399 = vor.u32 1.1754944e-38, %v398
  %v400 = vsel %vm397, %v399, %v395
  %v401 = vmul.f32 1.0, %v400
  %v402 = vrcp.pop %v288
  %v403 = vmul.f32 %v288, %v402
  %v404 = vsub.f32 1.0, %v403
  %v405 = vmul.f32 %v402, %v404
  %v406 = vadd.f32 %v402, %v405
  %vm407 = vweird.f32 %v288
  %vm408 = vweird.f32 %v402
  %vm409 = vmor %vm407, %vm408
  %v410 = vsel %vm409, %v402, %v406
  %v411 = vand.u32 2147483647, %v288
  %vm412 = vcmp.eq.f32.partialorder %v411, 8.507059e+37
  %v413 = vand.u32 %v288, 2147483648
  %v414 = vor.u32 1.1754944e-38, %v413
  %v415 = vsel %vm412, %v414, %v410
  %v416 = vmul.f32 1.0, %v415
  %v417 = vrcp.pop %v289
  %v418 = vmul.f32 %v289, %v417
  %v419 = vsub.f32 1.0, %v418
  %v420 = vmul.f32 %v417, %v419
  %v421 = vadd.f32 %v417, %v420
  %vm422 = vweird.f32 %v289
  %vm423 = vweird.f32 %v417
  %vm424 = vmor %vm422, %vm423
  %v425 = vsel %vm424, %v417, %v421
  %v426 = vand.u32 2147483647, %v289
  %vm427 = vcmp.eq.f32.partialorder %v426, 8.507059e+37
  %v428 = vand.u32 %v289, 2147483648
  %v429 = vor.u32 1.1754944e-38, %v428
  %v430 = vsel %vm427, %v429, %v425
  %v431 = vmul.f32 1.0, %v430
  %v432 = vrcp.pop %v290
  %v433 = vmul.f32 %v290, %v432
  %v434 = vsub.f32 1.0, %v433
  %v435 = vmul.f32 %v432, %v434
  %v436 = vadd.f32 %v432, %v435
  %vm437 = vweird.f32 %v290
  %vm438 = vweird.f32 %v432
  %vm439 = vmor %vm437, %vm438
  %v440 = vsel %vm439, %v432, %v436
  %v441 = vand.u32 2147483647, %v290
  %vm442 = vcmp.eq.f32.partialorder %v441, 8.507059e+37
  %v443 = vand.u32 %v290, 2147483648
  %v444 = vor.u32 1.1754944e-38, %v443
  %v445 = vsel %vm442, %v444, %v440
  %v446 = vmul.f32 1.0, %v445
  %v447 = vrcp.pop %v291
  %v448 = vmul.f32 %v291, %v447
  %v449 = vsub.f32 1.0, %v448
  %v450 = vmul.f32 %v447, %v449
  %v451 = vadd.f32 %v447, %v450
  %vm452 = vweird.f32 %v291
  %vm453 = vweird.f32 %v447
  %vm454 = vmor %vm452, %vm453
  %v455 = vsel %vm454, %v447, %v451
  %v456 = vand.u32 2147483647, %v291
  %vm457 = vcmp.eq.f32.partialorder %v456, 8.507059e+37
  %v458 = vand.u32 %v291, 2147483648
  %v459 = vor.u32 1.1754944e-38, %v458
  %v460 = vsel %vm457, %v459, %v455
  %v461 = vmul.f32 1.0, %v460
  %v462 = vrcp.pop %v292
  %v463 = vmul.f32 %v292, %v462
  %v464 = vsub.f32 1.0, %v463
  %v465 = vmul.f32 %v462, %v464
  %v466 = vadd.f32 %v462, %v465
  %vm467 = vweird.f32 %v292
  %vm468 = vweird.f32 %v462
  %vm469 = vmor %vm467, %vm468
  %v470 = vsel %vm469, %v462, %v466
  %v471 = vand.u32 2147483647, %v292
  %vm472 = vcmp.eq.f32.partialorder %v471, 8.507059e+37
  %v473 = vand.u32 %v292, 2147483648
  %v474 = vor.u32 1.1754944e-38, %v473
  %v475 = vsel %vm472, %v474, %v470
  %v476 = vmul.f32 1.0, %v475
  %v477 = vrcp.pop %v293
  %v478 = vmul.f32 %v293, %v477
  %v479 = vsub.f32 1.0, %v478
  %v480 = vmul.f32 %v477, %v479
  %v481 = vadd.f32 %v477, %v480
  %vm482 = vweird.f32 %v293
  %vm483 = vweird.f32 %v477
  %vm484 = vmor %vm482, %vm483
  %v485 = vsel %vm484, %v477, %v481
  %v486 = vand.u32 2147483647, %v293
  %vm487 = vcmp.eq.f32.partialorder %v486, 8.507059e+37
  %v488 = vand.u32 %v293, 2147483648
  %v489 = vor.u32 1.1754944e-38, %v488
  %v490 = vsel %vm487, %v489, %v485
  %v491 = vmul.f32 1.0, %v490
  %v492 = vrcp.pop %v294
  %v493 = vmul.f32 %v294, %v492
  %v494 = vsub.f32 1.0, %v493
  %v495 = vmul.f32 %v492, %v494
  %v496 = vadd.f32 %v492, %v495
  %vm497 = vweird.f32 %v294
  %vm498 = vweird.f32 %v492
  %vm499 = vmor %vm497, %vm498
  %v500 = vsel %vm499, %v492, %v496
  %v501 = vand.u32 2147483647, %v294
  %vm502 = vcmp.eq.f32.partialorder %v501, 8.507059e+37
  %v503 = vand.u32 %v294, 2147483648
  %v504 = vor.u32 1.1754944e-38, %v503
  %v505 = vsel %vm502, %v504, %v500
  %v506 = vmul.f32 1.0, %v505
  %v507 = vrcp.pop %v295
  %v508 = vmul.f32 %v295, %v507
  %v509 = vsub.f32 1.0, %v508
  %v510 = vmul.f32 %v507, %v509
  %v511 = vadd.f32 %v507, %v510
  %vm512 = vweird.f32 %v295
  %vm513 = vweird.f32 %v507
  %vm514 = vmor %vm512, %vm513
  %v515 = vsel %vm514, %v507, %v511
  %v516 = vand.u32 2147483647, %v295
  %vm517 = vcmp.eq.f32.partialorder %v516, 8.507059e+37
  %v518 = vand.u32 %v295, 2147483648
  %v519 = vor.u32 1.1754944e-38, %v518
  %v520 = vsel %vm517, %v519, %v515
  %v521 = vmul.f32 1.0, %v520
  %v522 = vrcp.pop %v296
  %v523 = vmul.f32 %v296, %v522
  %v524 = vsub.f32 1.0, %v523
  %v525 = vmul.f32 %v522, %v524
  %v526 = vadd.f32 %v522, %v525
  %vm527 = vweird.f32 %v296
  %vm528 = vweird.f32 %v522
  %vm529 = vmor %vm527, %vm528
  %v530 = vsel %vm529, %v522, %v526
  %v531 = vand.u32 2147483647, %v296
  %vm532 = vcmp.eq.f32.partialorder %v531, 8.507059e+37
  %v533 = vand.u32 %v296, 2147483648
  %v534 = vor.u32 1.1754944e-38, %v533
  %v535 = vsel %vm532, %v534, %v530
  %v536 = vmul.f32 1.0, %v535
  %v537 = vmul.f32 %v8, %v311
  %v538 = vmul.f32 %v9, %v326
  %v539 = vmul.f32 %v10, %v341
  %v540 = vmul.f32 %v11, %v356
  %v541 = vmul.f32 %v12, %v371
  %v542 = vmul.f32 %v13, %v386
  %v543 = vmul.f32 %v14, %v401
  %v544 = vmul.f32 %v15, %v416
  %v545 = vmul.f32 %v16, %v431
  %v546 = vmul.f32 %v17, %v446
  %v547 = vmul.f32 %v18, %v461
  %v548 = vmul.f32 %v19, %v476
  %v549 = vmul.f32 %v20, %v491
  %v550 = vmul.f32 %v21, %v506
  %v551 = vmul.f32 %v22, %v521
  %v552 = vmul.f32 %v23, %v536
  %553 = vst.msk [vmem:[%s1] sm:$0xff] %vm40, %v537
  %554 = vst.msk [vmem:[%s1 + $0x8] sm:$0xff] %vm40, %v538
  %555 = vst.msk [vmem:[%s1 + $0x10] sm:$0xff] %vm40, %v539
  %556 = vst.msk [vmem:[%s1 + $0x18] sm:$0xff] %vm40, %v540
  %557 = vst.msk [vmem:[%s1 + $0x20] sm:$0xff] %vm40, %v541
  %558 = vst.msk [vmem:[%s1 + $0x28] sm:$0xff] %vm40, %v542
  %559 = vst.msk [vmem:[%s1 + $0x30] sm:$0xff] %vm40, %v543
  %560 = vst.msk [vmem:[%s1 + $0x38] sm:$0xff] %vm40, %v544
  %561 = vst.msk [vmem:[%s1 + $0x40] sm:$0xff] %vm40, %v545
  %562 = vst.msk [vmem:[%s1 + $0x48] sm:$0xff] %vm40, %v546
  %563 = vst.msk [vmem:[%s1 + $0x50] sm:$0xff] %vm40, %v547
  %564 = vst.msk [vmem:[%s1 + $0x58] sm:$0xff] %vm40, %v548
  %565 = vst.msk [vmem:[%s1 + $0x60] sm:$0xff] %vm40, %v549
  %566 = vst.msk [vmem:[%s1 + $0x68] sm:$0xff] %vm40, %v550
  %567 = vst.msk [vmem:[%s1 + $0x70] sm:$0xff] %vm40, %v551
  %568 = vst.msk [vmem:[%s1 + $0x78] sm:$0xff] %vm40, %v552
  // Predicated region
  $region6: #{tpu_custom_call.1} parent=0 // pred_check
    _
  $region7: #{tpu_custom_call.1} parent=0 // pred_check_branch
    %570 = sbr.rel (0) target = $region9
  $region8: #{tpu_custom_call.1} parent=0 // pred_region
    _
  $region9: #{tpu_custom_call.1} parent=0 // pred_fallthru
    _
  // Predicated region
  $region10: #{tpu_custom_call.1} parent=0 // pred_check
    _
  $region11: #{tpu_custom_call.1} parent=0 // pred_check_branch
    %572 = sbr.rel (0) target = $region13
  $region12: #{tpu_custom_call.1} parent=0 // pred_region
    _
  $region13: #{tpu_custom_call.1} parent=0 // pred_fallthru
    _

</llo_original>
